<compile_context>
chip_gen: v6e
topology: v6e:2x2x1
jax: 0.10.0
libtpu: 0.0.40
codegen_flags: <defaults>
</compile_context>

<pallas_src>
import functools

import jax
import jax.numpy as jnp
import numpy as np
from jax.experimental import pallas as pl
from jax.experimental.pallas import tpu as pltpu

NEG_SLOPE_ATT = 0.2          # LeakyReLU slope for attention scores (act_att)
MASK_VALUE = -9e15           # matches -9000000000000000.0 in the PyTorch code
LANE = 128


def _round_up(v, m):
    return (v + m - 1) // m * m


def _vmem_capacity_bytes():
    """Physical VMEM of the current TPU generation (conservative fallback)."""
    try:
        info = pltpu.get_tpu_info()
        cap = getattr(info, "vmem_capacity_bytes", None)
        if cap:
            return int(cap)
    except Exception:
        pass
    return 64 * 2**20  # v7x-sized conservative default


def _vmem_need(tile_q, n_pad, f_out_pad, h_bytes, att_bytes):
    """Per-step VMEM of the double-buffered streamed blocks (bytes)."""
    return (2 * tile_q * n_pad * 1               # adj row tile (int8)
            + 2 * n_pad * f_out_pad * h_bytes    # h block (one batch element)
            + 2 * tile_q * LANE * 4              # f1 block (lane-padded)
            + 2 * 8 * n_pad * 4                  # f2 block (sublane-padded)
            + 2 * tile_q * f_out_pad * 4         # out block (f32)
            + 2 * tile_q * n_pad * att_bytes)    # att block


def _pick_tile_q(n_pad, f_out_pad, h_bytes, att_bytes, budget):
    """Largest lane-dense row tile that divides n_pad and fits the budget."""
    cands = [t for t in (2048, 1024, 512, 256, 128) if n_pad % t == 0]
    for t in cands:
        if _vmem_need(t, n_pad, f_out_pad, h_bytes, att_bytes) <= budget:
            return t
    return cands[-1]


def _make_kernel(neg_slope, mask_value, approx_recip):
    def kernel(adj_ref, h_ref, f1_ref, f2_ref, out_ref, att_ref):
        # adj_ref: (TILE_Q, N_pad)         int8 row slice of adjacency
        # h_ref:   (1, N_pad, F_out_pad)   transformed features (compute dtype)
        # f1_ref:  (1, TILE_Q, 1)          f32, h . a1 for this row tile
        # f2_ref:  (1, 1, N_pad)           f32, h . a2 for all nodes
        # out_ref: (1, TILE_Q, F_out_pad)  f32
        # att_ref: (1, TILE_Q, N_pad)      f32 or bf16

        # e_ij = LeakyReLU(a1.h_i + a2.h_j)   (slope < 1 -> max form, one VPU op)
        e = f1_ref[0] + f2_ref[0]                              # (TILE_Q, N_pad)
        e = jnp.maximum(e, neg_slope * e)

        # adjacency masking + row softmax (padded columns have adj == 0 and
        # underflow to exactly 0 after exp, so padding is exact)
        neighbor = adj_ref[...].astype(jnp.float32) > 0.0
        masked = jnp.where(neighbor, e, jnp.float32(mask_value))
        m = jnp.max(masked, axis=-1, keepdims=True)
        ex = jnp.exp(masked - m)
        denom = jnp.sum(ex, axis=-1, keepdims=True)
        att = ex * pl.reciprocal(denom, approx=approx_recip)   # (TILE_Q, N_pad)

        # h' = attention @ h, then act_gat = ReLU (concat=True)
        h_all = h_ref[0]
        hp = jnp.dot(att.astype(h_all.dtype), h_all,
                     preferred_element_type=jnp.float32)       # (TILE_Q, F_out_pad)
        out_ref[0] = jnp.maximum(hp, 0.0).astype(out_ref.dtype)
        att_ref[0] = att.astype(att_ref.dtype)

    return kernel


@functools.partial(jax.jit, static_argnames=("precise",))
def gat_forward(x, adj, W, a, *, precise=False):
    """x: [B, N, F_in], adj: [N, N], W: [F_in, F_out], a: [2*F_out, 1].

    precise=False (default): bf16 h / bf16 attention output + approx reciprocal.
    precise=True:            f32 everywhere + exact reciprocal (matches PyTorch
                             math to ~1e-4).
    Returns (out [B,N,F_out] f32, attention [B,N,N,1] in f32 or bf16).
    """
    B, N, F_in = x.shape
    F_out = W.shape[1]

    cdt = jnp.float32 if precise else jnp.bfloat16
    att_dt = jnp.float32 if precise else jnp.bfloat16
    approx_recip = not precise

    n_pad = _round_up(N, LANE)
    f_out_pad = _round_up(F_out, LANE)

    # ---- Hoisted feature transform + attention projections (one batched XLA
    # matmul; logits f1/f2 are always computed from f32 h for accuracy).
    h32 = jnp.matmul(x.astype(cdt), W.astype(cdt),
                     preferred_element_type=jnp.float32)            # [B, N, F_out]
    f1 = jnp.matmul(h32, a[:F_out, :].astype(jnp.float32))          # [B, N, 1]
    f2 = jnp.matmul(h32, a[F_out:, :].astype(jnp.float32))          # [B, N, 1]

    # ---- Zero-pad to lane-dense shapes; adjacency narrowed to int8.
    h_in = jnp.zeros((B, n_pad, f_out_pad), cdt).at[:, :N, :F_out].set(h32.astype(cdt))
    f1p = jnp.zeros((B, n_pad, 1), jnp.float32).at[:, :N, :].set(f1)
    f2p = jnp.zeros((B, 1, n_pad), jnp.float32).at[:, 0, :N].set(f2[:, :, 0])
    adjp = jnp.zeros((n_pad, n_pad), jnp.int8).at[:N, :N].set((adj > 0).astype(jnp.int8))

    # ---- Generation-aware tiling / VMEM limit.
    h_bytes = jnp.dtype(cdt).itemsize
    att_bytes = jnp.dtype(att_dt).itemsize
    cap = _vmem_capacity_bytes()
    if cap >= 96 * 2**20:                 # v5e / v6e: 128 MiB physical VMEM
        budget, limit_cap = 80 * 2**20, 100 * 2**20
    else:                                 # v7x: 64 MiB physical VMEM
        budget, limit_cap = 40 * 2**20, 56 * 2**20
    tile_q = _pick_tile_q(n_pad, f_out_pad, h_bytes, att_bytes, budget)
    num_q = n_pad // tile_q
    need = _vmem_need(tile_q, n_pad, f_out_pad, h_bytes, att_bytes)
    vmem_limit = min(max(need + (8 << 20), 32 << 20), limit_cap)
    vmem_limit = int(max(vmem_limit, need + (2 << 20)))   # never clamp below need

    kernel = _make_kernel(NEG_SLOPE_ATT, MASK_VALUE, approx_recip)

    out_p, att_p = pl.pallas_call(
        kernel,
        out_shape=(
            jax.ShapeDtypeStruct((B, n_pad, f_out_pad), jnp.float32),
            jax.ShapeDtypeStruct((B, n_pad, n_pad), att_dt),
        ),
        grid_spec=pltpu.PrefetchScalarGridSpec(
            num_scalar_prefetch=0,
            # batch innermost: each adj row tile is read from HBM once and
            # reused across all batch elements.
            grid=(num_q, B),
            in_specs=[
                pl.BlockSpec((tile_q, n_pad), lambda q, b: (q, 0)),           # adj (int8)
                pl.BlockSpec((1, n_pad, f_out_pad), lambda q, b: (b, 0, 0)),  # h
                pl.BlockSpec((1, tile_q, 1), lambda q, b: (b, q, 0)),         # f1
                pl.BlockSpec((1, 1, n_pad), lambda q, b: (b, 0, 0)),          # f2
            ],
            out_specs=[
                pl.BlockSpec((1, tile_q, f_out_pad), lambda q, b: (b, q, 0)),
                pl.BlockSpec((1, tile_q, n_pad), lambda q, b: (b, q, 0)),
            ],
        ),
        compiler_params=pltpu.CompilerParams(
            dimension_semantics=("parallel", "parallel"),
            vmem_limit_bytes=vmem_limit,
        ),
    )(adjp, h_in, f1p, f2p)

    out = out_p[:, :N, :F_out]
    att = att_p[:, :N, :N]
    # PyTorch returns attention with trailing singleton dim [B, N, N, 1]
    return out, att[..., None]


def _reference(x, adj, W, a):
    """Pure-JAX reference mirroring the PyTorch forward (eval mode)."""
    h = jnp.matmul(x, W)
    F_out = W.shape[1]
    f1 = jnp.matmul(h, a[:F_out, :])               # [B, N, 1]
    f2 = jnp.matmul(h, a[F_out:, :])               # [B, N, 1]
    e = f1 + jnp.swapaxes(f2, -1, -2)              # [B, N, N]
    e = jnp.where(e > 0, e, NEG_SLOPE_ATT * e)
    masked = jnp.where(adj[None] > 0, e, jnp.full_like(e, MASK_VALUE))
    att = jax.nn.softmax(masked, axis=-1)
    h_prime = jnp.matmul(att, h)
    return jnp.maximum(h_prime, 0.0), att[..., None]


def _kaiming_uniform(key, shape, fan_in, gain):
    bound = gain * np.sqrt(3.0 / fan_in)
    return jax.random.uniform(key, shape, jnp.float32, -bound, bound)


if __name__ == "__main__":
    B, N, F_in, F_out = 2, 8, 16, 32

    key = jax.random.PRNGKey(0)
    k_x, k_adj, k_w, k_a = jax.random.split(key, 4)

    # Node features and a random symmetric binary adjacency with self-loops.
    x = jax.random.normal(k_x, (B, N, F_in), jnp.float32)
    adj_rand = jax.random.uniform(k_adj, (N, N))
    adj = (adj_rand > 0.5).astype(jnp.float32)
    adj = jnp.maximum(adj, adj.T)
    adj = jnp.maximum(adj, jnp.eye(N, dtype=jnp.float32))

    # Parameter init mirroring the module's kaiming_uniform_ choices
    # (act_gat = ReLU -> gain sqrt(2); `a` uses leaky_relu gain with slope 0.2).
    W = _kaiming_uniform(k_w, (F_in, F_out), fan_in=F_in, gain=np.sqrt(2.0))
    gain_a = np.sqrt(2.0 / (1.0 + NEG_SLOPE_ATT ** 2))
    a = _kaiming_uniform(k_a, (2 * F_out, 1), fan_in=2 * F_out, gain=gain_a)

    out_ref, att_ref = _reference(x, adj, W, a)

    # Precise path: f32 everywhere + exact reciprocal — tight correctness check.
    out_p, att_p = gat_forward(x, adj, W, a, precise=True)
    out_p = jax.block_until_ready(out_p)
    att_p = jax.block_until_ready(att_p)
    assert out_p.shape == (B, N, F_out)
    assert att_p.shape == (B, N, N, 1)
    np.testing.assert_allclose(np.asarray(out_p), np.asarray(out_ref), rtol=1e-4, atol=1e-4)
    np.testing.assert_allclose(np.asarray(att_p), np.asarray(att_ref), rtol=1e-4, atol=1e-4)

    # Fast path: bf16 h / bf16 attention output + approx reciprocal — attention
    # rows sum to ~1 (not exactly 1); relaxed tolerance per the precision budget.
    out_f, att_f = gat_forward(x, adj, W, a, precise=False)
    out_f = jax.block_until_ready(out_f)
    att_f = jax.block_until_ready(att_f)
    np.testing.assert_allclose(np.asarray(out_f), np.asarray(out_ref), rtol=1e-1, atol=1e-1)
    np.testing.assert_allclose(np.asarray(att_f.astype(jnp.float32)), np.asarray(att_ref),
                               rtol=1e-1, atol=1e-1)

    print("KERNEL_OK")
</pallas_src>

<mosaic_0001>
module attributes {stable_mosaic.version = 11 : i64} {
  func.func @kernel(%arg0: i32, %arg1: i32, %arg2: memref<128x128xi8, #tpu.memory_space<vmem>>, %arg3: memref<1x128x128xf32, #tpu.memory_space<vmem>>, %arg4: memref<1x128x1xf32, #tpu.memory_space<vmem>>, %arg5: memref<1x1x128xf32, #tpu.memory_space<vmem>>, %arg6: memref<1x128x128xf32, #tpu.memory_space<vmem>>, %arg7: memref<1x128x128xf32, #tpu.memory_space<vmem>>) attributes {dimension_semantics = [#tpu.dimension_semantics<parallel>, #tpu.dimension_semantics<parallel>], iteration_bounds = array<i64: 1, 2>, scalar_prefetch = 0 : i64, scratch_operands = 0 : i64, tpu.core_type = #tpu.core_type<tc>, window_params = [{transform_indices = @transform_0, window_bounds = array<i64: 128, 128>}, {transform_indices = @transform_1, window_bounds = array<i64: 1, 128, 128>}, {transform_indices = @transform_2, window_bounds = array<i64: 1, 128, 1>}, {transform_indices = @transform_3, window_bounds = array<i64: 1, 1, 128>}, {transform_indices = @transform_4, window_bounds = array<i64: 1, 128, 128>}, {transform_indices = @transform_5, window_bounds = array<i64: 1, 128, 128>}]} {
    %c0 = arith.constant 0 : index
    %c0_0 = arith.constant 0 : index
    %c0_1 = arith.constant 0 : index
    %0 = vector.load %arg4[%c0, %c0_0, %c0_1] : memref<1x128x1xf32, #tpu.memory_space<vmem>>, vector<1x128x1xf32>
    %1 = vector.shape_cast %0 : vector<1x128x1xf32> to vector<128x1xf32>
    %c0_2 = arith.constant 0 : index
    %c0_3 = arith.constant 0 : index
    %c0_4 = arith.constant 0 : index
    %2 = vector.load %arg5[%c0_2, %c0_3, %c0_4] : memref<1x1x128xf32, #tpu.memory_space<vmem>>, vector<1x1x128xf32>
    %3 = vector.shape_cast %2 : vector<1x1x128xf32> to vector<1x128xf32>
    %4 = vector.broadcast %1 : vector<128x1xf32> to vector<128x128xf32>
    %5 = vector.broadcast %3 : vector<1x128xf32> to vector<128x128xf32>
    %6 = arith.addf %4, %5 : vector<128x128xf32>
    %cst = arith.constant 2.000000e-01 : f32
    %7 = vector.broadcast %cst : f32 to vector<128x128xf32>
    %8 = arith.mulf %7, %6 : vector<128x128xf32>
    %9 = arith.maximumf %6, %8 : vector<128x128xf32>
    %c0_5 = arith.constant 0 : index
    %c0_6 = arith.constant 0 : index
    %10 = vector.load %arg2[%c0_5, %c0_6] : memref<128x128xi8, #tpu.memory_space<vmem>>, vector<128x128xi8>
    %11 = arith.sitofp %10 : vector<128x128xi8> to vector<128x128xf32>
    %cst_7 = arith.constant 0.000000e+00 : f32
    %12 = vector.broadcast %cst_7 : f32 to vector<128x128xf32>
    %13 = arith.cmpf ogt, %11, %12 : vector<128x128xf32>
    %cst_8 = arith.constant -9.000000e+15 : f32
    %14 = vector.broadcast %cst_8 : f32 to vector<128x128xf32>
    %15 = arith.select %13, %9, %14 : vector<128x128xi1>, vector<128x128xf32>
    %cst_9 = arith.constant dense<0xFF800000> : vector<128xf32>
    %16 = vector.multi_reduction <maximumf>, %15, %cst_9 [1] : vector<128x128xf32> to vector<128xf32>
    %17 = vector.shape_cast %16 : vector<128xf32> to vector<128x1xf32>
    %18 = vector.broadcast %17 : vector<128x1xf32> to vector<128x128xf32>
    %19 = arith.subf %15, %18 : vector<128x128xf32>
    %20 = math.exp %19 : vector<128x128xf32>
    %cst_10 = arith.constant dense<0.000000e+00> : vector<128xf32>
    %21 = vector.multi_reduction <add>, %20, %cst_10 [1] : vector<128x128xf32> to vector<128xf32>
    %22 = vector.shape_cast %21 : vector<128xf32> to vector<128x1xf32>
    %23 = tpu.reciprocal %22 : vector<128x1xf32> -> vector<128x1xf32>
    %24 = vector.broadcast %23 : vector<128x1xf32> to vector<128x128xf32>
    %25 = arith.mulf %20, %24 : vector<128x128xf32>
    %c0_11 = arith.constant 0 : index
    %c0_12 = arith.constant 0 : index
    %c0_13 = arith.constant 0 : index
    %26 = vector.load %arg3[%c0_11, %c0_12, %c0_13] : memref<1x128x128xf32, #tpu.memory_space<vmem>>, vector<1x128x128xf32>
    %27 = vector.shape_cast %26 : vector<1x128x128xf32> to vector<128x128xf32>
    %cst_14 = arith.constant dense<0.000000e+00> : vector<128x128xf32>
    %28 = tpu.matmul %25, %27, %cst_14 {dimension_numbers = #tpu.dot_dimension_numbers<[1], [0], [0], [1], [0, 0, 1, 1], [], []>} : vector<128x128xf32>, vector<128x128xf32>, vector<128x128xf32> -> vector<128x128xf32>
    %cst_15 = arith.constant 0.000000e+00 : f32
    %29 = vector.broadcast %cst_15 : f32 to vector<128x128xf32>
    %30 = arith.maximumf %28, %29 : vector<128x128xf32>
    %c0_16 = arith.constant 0 : index
    %c0_17 = arith.constant 0 : index
    %c0_18 = arith.constant 0 : index
    %31 = vector.load %arg6[%c0_16, %c0_17, %c0_18] : memref<1x128x128xf32, #tpu.memory_space<vmem>>, vector<1x128x128xf32>
    %32 = vector.shape_cast %31 : vector<1x128x128xf32> to vector<128x128xf32>
    %33 = vector.shape_cast %30 : vector<128x128xf32> to vector<1x128x128xf32>
    tpu.vector_store %arg6[%c0_16, %c0_17, %c0_18], %33 {strides = array<i32>} : memref<1x128x128xf32, #tpu.memory_space<vmem>>, vector<1x128x128xf32>,
    %c0_19 = arith.constant 0 : index
    %c0_20 = arith.constant 0 : index
    %c0_21 = arith.constant 0 : index
    %34 = vector.load %arg7[%c0_19, %c0_20, %c0_21] : memref<1x128x128xf32, #tpu.memory_space<vmem>>, vector<1x128x128xf32>
    %35 = vector.shape_cast %34 : vector<1x128x128xf32> to vector<128x128xf32>
    %36 = vector.shape_cast %25 : vector<128x128xf32> to vector<1x128x128xf32>
    tpu.vector_store %arg7[%c0_19, %c0_20, %c0_21], %36 {strides = array<i32>} : memref<1x128x128xf32, #tpu.memory_space<vmem>>, vector<1x128x128xf32>,
    return
  }
  func.func @transform_0(%arg0: i32, %arg1: i32) -> (i32, i32) {
    %c0_i32 = arith.constant 0 : i32
    %c0_i32_0 = arith.constant 0 : i32
    return %arg0, %c0_i32 : i32, i32
  }
  func.func @transform_1(%arg0: i32, %arg1: i32) -> (i32, i32, i32) {
    %c0_i32 = arith.constant 0 : i32
    %c0_i32_0 = arith.constant 0 : i32
    %c0_i32_1 = arith.constant 0 : i32
    return %arg1, %c0_i32, %c0_i32_0 : i32, i32, i32
  }
  func.func @transform_2(%arg0: i32, %arg1: i32) -> (i32, i32, i32) {
    %c0_i32 = arith.constant 0 : i32
    %c0_i32_0 = arith.constant 0 : i32
    return %arg1, %arg0, %c0_i32 : i32, i32, i32
  }
  func.func @transform_3(%arg0: i32, %arg1: i32) -> (i32, i32, i32) {
    %c0_i32 = arith.constant 0 : i32
    %c0_i32_0 = arith.constant 0 : i32
    %c0_i32_1 = arith.constant 0 : i32
    return %arg1, %c0_i32, %c0_i32_0 : i32, i32, i32
  }
  func.func @transform_4(%arg0: i32, %arg1: i32) -> (i32, i32, i32) {
    %c0_i32 = arith.constant 0 : i32
    %c0_i32_0 = arith.constant 0 : i32
    return %arg1, %arg0, %c0_i32 : i32, i32, i32
  }
  func.func @transform_5(%arg0: i32, %arg1: i32) -> (i32, i32, i32) {
    %c0_i32 = arith.constant 0 : i32
    %c0_i32_0 = arith.constant 0 : i32
    return %arg1, %arg0, %c0_i32 : i32, i32, i32
  }
}

</mosaic_0001>

<llo_original>
// kernel: gat_forward.1
$region0: #{gat_forward.1}
  #allocation0 [shape = 'u32[]', space=smem, size = 0x4, offset = 0x4, fixed_abs, tag = 'smem constant byte address 0x4 - core index']
  #allocation1 [shape = 'u32[144,128]{1,0:T(1,128)}', space=vmem, size = 0x12000, scoped, tag = 'internal scratch']
  %s0 = inlined_call_operand.vmem [shape: s8[128,128], index: 0, kind: input, shape index: {}]
  %s1 = inlined_call_operand.vmem [shape: f32[2,128,128], index: 1, kind: input, shape index: {}]
  %s2 = inlined_call_operand.vmem [shape: f32[2,128,1], index: 2, kind: input, shape index: {}]
  %s3 = inlined_call_operand.vmem [shape: f32[2,1,128], index: 3, kind: input, shape index: {}]
  %s4 = inlined_call_operand.vmem [shape: f32[2,128,128], index: 4, kind: output, shape index: {0}]
  %s5 = inlined_call_operand.vmem [shape: f32[2,128,128], index: 5, kind: output, shape index: {1}]
  %6 = xla_tuple %s4, %s5
  %s7 = sld [smem:[#allocation0]]
  $region57: #{gat_forward.1} parent=0
    _
  %s9 = ssub.s32 1, %s7
  %s10 = scalar_select 0, %s9, %s7
  loop: start=0, step=1, limit=4
  $region2: #{gat_forward.1} parent=0 // loop_pre_header
    _
  $region3: #{gat_forward.1} parent=0 // loop_header
    %s12 = sphi 0, %s16
    %p13 = scmp.ge.s32.totalorder %s12, 4
    %s19 = sphi 0, %s31
    %s20 = sphi 0, %s27
    %s21 = sphi 0, %s19
    %s22 = sphi 0, %s20
    %s23 = sphi 0, %s21
    %s24 = sphi 0, %s22
    %s34 = sphi 0, %s36
    %s37 = sphi 0, %s34
    %s38 = sphi 0, %s37
    %s54 = sphi 0, %s38
    %s60 = sphi 0, %s62
    %s63 = sphi 0, %s60
    %s64 = sphi 0, %s63
    %s80 = sphi 0, %s64
    %s88 = sphi 0, %s90
    %s91 = sphi 0, %s88
    %s92 = sphi 0, %s91
    %s108 = sphi 0, %s92
    %s114 = sphi 0, %s116
    %s117 = sphi 0, %s114
    %s118 = sphi 0, %s117
    %s134 = sphi 0, %s118
    %s142 = sphi 0, %s144
    %s145 = sphi 0, %s142
    %s146 = sphi 0, %s145
    %s162 = sphi 0, %s146
    %s170 = sphi 0, %s172
    %s173 = sphi 0, %s170
    %s174 = sphi 0, %s173
    %s190 = sphi 0, %s174
  $region4: #{gat_forward.1} parent=0 // loop_header_branch
    %15 = sbr.rel (%p13) target = $region8
  $region5: #{gat_forward.1} parent=0 // loop_body
    %s17 = ssub.s32 %s12, 1
    %s18 = ssub.s32 %s12, 2
    %s25 = sadd.s32 1, %s20
    %p26 = scmp.ge.s32.totalorder %s25, 2
    %s27 = scalar_select %p26, 0, %s25
    %s28 = sadd.s32 1, %s19
    %s29 = scalar_select %p26, %s28, %s19
    %p30 = scmp.ge.s32.totalorder %s29, 1
    %s31 = scalar_select %p30, 0, %s29
    %s32 = ssub.s32 %s19, %s31
    %p33 = scmp.eq.s32.totalorder %s32, 0
    %s35 = sadd.s32 %s34, 1
    %s36 = scalar_select %p33, %s34, %s35
    %p39 = pneg %p33
    %p40 = scmp.eq.s32.totalorder %s12, 1
    %p41 = por %p39, %p40
    %p42 = scmp.ne.s32.totalorder %s34, %s37
    %p43 = scmp.eq.s32.totalorder %s12, 0
    %p44 = por %p42, %p43
    %p45 = scmp.ne.s32.totalorder %s34, %s37
    %p46 = scmp.eq.s32.totalorder %s17, 1
    %p47 = por %p45, %p46
    %p48 = scmp.ne.s32.totalorder %s37, %s38
    %p49 = scmp.eq.s32.totalorder %s17, 0
    %p50 = por %p48, %p49
    %p51 = scmp.ne.s32.totalorder %s37, %s38
    %p52 = scmp.eq.s32.totalorder %s18, 1
    %p53 = por %p51, %p52
    %p55 = scmp.ne.s32.totalorder %s38, %s54
    %p56 = scmp.eq.s32.totalorder %s18, 0
    %p57 = por %p55, %p56
    %s58 = ssub.s32 %s20, %s27
    %p59 = scmp.eq.s32.totalorder %s58, 0
    %s61 = sadd.s32 %s60, 1
    %s62 = scalar_select %p59, %s60, %s61
    %p65 = pneg %p59
    %p66 = scmp.eq.s32.totalorder %s12, 1
    %p67 = por %p65, %p66
    %p68 = scmp.ne.s32.totalorder %s60, %s63
    %p69 = scmp.eq.s32.totalorder %s12, 0
    %p70 = por %p68, %p69
    %p71 = scmp.ne.s32.totalorder %s60, %s63
    %p72 = scmp.eq.s32.totalorder %s17, 1
    %p73 = por %p71, %p72
    %p74 = scmp.ne.s32.totalorder %s63, %s64
    %p75 = scmp.eq.s32.totalorder %s17, 0
    %p76 = por %p74, %p75
    %p77 = scmp.ne.s32.totalorder %s63, %s64
    %p78 = scmp.eq.s32.totalorder %s18, 1
    %p79 = por %p77, %p78
    %p81 = scmp.ne.s32.totalorder %s64, %s80
    %p82 = scmp.eq.s32.totalorder %s18, 0
    %p83 = por %p81, %p82
    %s84 = ssub.s32 %s20, %s27
    %s85 = ssub.s32 %s19, %s31
    %s86 = sor.u32 %s84, %s85
    %p87 = scmp.eq.s32.totalorder %s86, 0
    %s89 = sadd.s32 %s88, 1
    %s90 = scalar_select %p87, %s88, %s89
    %p93 = pneg %p87
    %p94 = scmp.eq.s32.totalorder %s12, 1
    %p95 = por %p93, %p94
    %p96 = scmp.ne.s32.totalorder %s88, %s91
    %p97 = scmp.eq.s32.totalorder %s12, 0
    %p98 = por %p96, %p97
    %p99 = scmp.ne.s32.totalorder %s88, %s91
    %p100 = scmp.eq.s32.totalorder %s17, 1
    %p101 = por %p99, %p100
    %p102 = scmp.ne.s32.totalorder %s91, %s92
    %p103 = scmp.eq.s32.totalorder %s17, 0
    %p104 = por %p102, %p103
    %p105 = scmp.ne.s32.totalorder %s91, %s92
    %p106 = scmp.eq.s32.totalorder %s18, 1
    %p107 = por %p105, %p106
    %p109 = scmp.ne.s32.totalorder %s92, %s108
    %p110 = scmp.eq.s32.totalorder %s18, 0
    %p111 = por %p109, %p110
    %s112 = ssub.s32 %s20, %s27
    %p113 = scmp.eq.s32.totalorder %s112, 0
    %s115 = sadd.s32 %s114, 1
    %s116 = scalar_select %p113, %s114, %s115
    %p119 = pneg %p113
    %p120 = scmp.eq.s32.totalorder %s12, 1
    %p121 = por %p119, %p120
    %p122 = scmp.ne.s32.totalorder %s114, %s117
    %p123 = scmp.eq.s32.totalorder %s12, 0
    %p124 = por %p122, %p123
    %p125 = scmp.ne.s32.totalorder %s114, %s117
    %p126 = scmp.eq.s32.totalorder %s17, 1
    %p127 = por %p125, %p126
    %p128 = scmp.ne.s32.totalorder %s117, %s118
    %p129 = scmp.eq.s32.totalorder %s17, 0
    %p130 = por %p128, %p129
    %p131 = scmp.ne.s32.totalorder %s117, %s118
    %p132 = scmp.eq.s32.totalorder %s18, 1
    %p133 = por %p131, %p132
    %p135 = scmp.ne.s32.totalorder %s118, %s134
    %p136 = scmp.eq.s32.totalorder %s18, 0
    %p137 = por %p135, %p136
    %s138 = ssub.s32 %s20, %s27
    %s139 = ssub.s32 %s19, %s31
    %s140 = sor.u32 %s138, %s139
    %p141 = scmp.eq.s32.totalorder %s140, 0
    %s143 = sadd.s32 %s142, 1
    %s144 = scalar_select %p141, %s142, %s143
    %p147 = pneg %p141
    %p148 = scmp.eq.s32.totalorder %s12, 1
    %p149 = por %p147, %p148
    %p150 = scmp.ne.s32.totalorder %s142, %s145
    %p151 = scmp.eq.s32.totalorder %s12, 0
    %p152 = por %p150, %p151
    %p153 = scmp.ne.s32.totalorder %s142, %s145
    %p154 = scmp.eq.s32.totalorder %s17, 1
    %p155 = por %p153, %p154
    %p156 = scmp.ne.s32.totalorder %s145, %s146
    %p157 = scmp.eq.s32.totalorder %s17, 0
    %p158 = por %p156, %p157
    %p159 = scmp.ne.s32.totalorder %s145, %s146
    %p160 = scmp.eq.s32.totalorder %s18, 1
    %p161 = por %p159, %p160
    %p163 = scmp.ne.s32.totalorder %s146, %s162
    %p164 = scmp.eq.s32.totalorder %s18, 0
    %p165 = por %p163, %p164
    %s166 = ssub.s32 %s20, %s27
    %s167 = ssub.s32 %s19, %s31
    %s168 = sor.u32 %s166, %s167
    %p169 = scmp.eq.s32.totalorder %s168, 0
    %s171 = sadd.s32 %s170, 1
    %s172 = scalar_select %p169, %s170, %s171
    %p175 = pneg %p169
    %p176 = scmp.eq.s32.totalorder %s12, 1
    %p177 = por %p175, %p176
    %p178 = scmp.ne.s32.totalorder %s170, %s173
    %p179 = scmp.eq.s32.totalorder %s12, 0
    %p180 = por %p178, %p179
    %p181 = scmp.ne.s32.totalorder %s170, %s173
    %p182 = scmp.eq.s32.totalorder %s17, 1
    %p183 = por %p181, %p182
    %p184 = scmp.ne.s32.totalorder %s173, %s174
    %p185 = scmp.eq.s32.totalorder %s17, 0
    %p186 = por %p184, %p185
    %p187 = scmp.ne.s32.totalorder %s173, %s174
    %p188 = scmp.eq.s32.totalorder %s18, 1
    %p189 = por %p187, %p188
    %p191 = scmp.ne.s32.totalorder %s174, %s190
    %p192 = scmp.eq.s32.totalorder %s18, 0
    %p193 = por %p191, %p192
    %p194 = scmp.le.s32.totalorder 1, %s12
    %p195 = scmp.lt.s32.totalorder %s12, 3
    %p196 = pnand %p194, %p195
    %p197 = pneg %p196
    // Predicated region
    $region9: #{gat_forward.1} parent=5 // pred_check
      _
    $region10: #{gat_forward.1} parent=5 // pred_check_branch
      %199 = sbr.rel (%p196) target = $region12
    $region11: #{gat_forward.1} parent=5 // pred_region
      %s200 = ssub.s32 %s12, 1
      // Predicated region
      $region13: #{gat_forward.1} parent=11 // pred_check
        %p201 = pneg %p50
      $region14: #{gat_forward.1} parent=11 // pred_check_branch
        %203 = sbr.rel (%p201) target = $region16
      $region15: #{gat_forward.1} parent=11 // pred_region
        %s204 = smul.u32 4, %s21
        %p205 = scmp.lt.s32.totalorder %s204, 3
        %s206 = scalar_select %p205, %s204, 3
        %s207 = smul.addr %s206, 8
        %s208 = scalar_lea.vmem %s0, %s207
        %s209 = smul.u32 4, %s21
      $region16: #{gat_forward.1} parent=11 // pred_fallthru
        _
    $region12: #{gat_forward.1} parent=5 // pred_fallthru
      _
    %p210 = scmp.lt.s32.totalorder %s12, 2
    // Predicated region
    $region17: #{gat_forward.1} parent=5 // pred_check
      %p211 = pneg %p210
    $region18: #{gat_forward.1} parent=5 // pred_check_branch
      %213 = sbr.rel (%p211) target = $region20
    $region19: #{gat_forward.1} parent=5 // pred_region
      // Predicated region
      $region21: #{gat_forward.1} parent=19 // pred_check
        %p214 = pneg %p70
      $region22: #{gat_forward.1} parent=19 // pred_check_branch
        %216 = sbr.rel (%p214) target = $region24
      $region23: #{gat_forward.1} parent=19 // pred_region
        %p217 = scmp.lt.s32.totalorder %s20, 1
        %s218 = scalar_select %p217, %s20, 1
        %s219 = smul.addr %s218, 16
        %s220 = smul.addr %s219, 8
        %s221 = scalar_lea.vmem %s1, %s220
      $region24: #{gat_forward.1} parent=19 // pred_fallthru
        _
      // Predicated region
      $region25: #{gat_forward.1} parent=19 // pred_check
        %p222 = pneg %p98
      $region26: #{gat_forward.1} parent=19 // pred_check_branch
        %224 = sbr.rel (%p222) target = $region28
      $region27: #{gat_forward.1} parent=19 // pred_region
        %s225 = smul.u32 16, %s19
        %p226 = scmp.lt.s32.totalorder %s20, 1
        %s227 = scalar_select %p226, %s20, 1
        %p228 = scmp.lt.s32.totalorder %s225, 15
        %s229 = scalar_select %p228, %s225, 15
        %s230 = smul.addr %s227, 16
        %s231 = sadd.s32 %s229, %s230
        %s232 = smul.addr %s231, 8
        %s233 = scalar_lea.vmem %s2, %s232
        %s234 = smul.u32 16, %s19
      $region28: #{gat_forward.1} parent=19 // pred_fallthru
        _
      // Predicated region
      $region29: #{gat_forward.1} parent=19 // pred_check
        %p235 = pneg %p124
      $region30: #{gat_forward.1} parent=19 // pred_check_branch
        %237 = sbr.rel (%p235) target = $region32
      $region31: #{gat_forward.1} parent=19 // pred_region
        %p238 = scmp.lt.s32.totalorder %s20, 1
        %s239 = scalar_select %p238, %s20, 1
        %s240 = scalar_lea.vmem %s3, %s239
      $region32: #{gat_forward.1} parent=19 // pred_fallthru
        _
    $region20: #{gat_forward.1} parent=5 // pred_fallthru
      _
    %p241 = scmp.le.s32.totalorder 1, %s12
    %p242 = scmp.lt.s32.totalorder %s12, 3
    %p243 = pnand %p241, %p242
    %p244 = pneg %p243
    // Predicated region
    $region33: #{gat_forward.1} parent=5 // pred_check
      _
    $region34: #{gat_forward.1} parent=5 // pred_check_branch
      %246 = sbr.rel (%p243) target = $region36
    $region35: #{gat_forward.1} parent=5 // pred_region
      %s247 = ssub.s32 %s12, 1
      %s248 = smul.u32 4, %s21
      %p249 = scmp.lt.s32.totalorder %s248, 3
      %s250 = scalar_select %p249, %s248, 3
      %s251 = smul.addr %s250, 8
      %s252 = scalar_lea.vmem %s0, %s251
      %p253 = pneg %p50
      %p254 = pneg %p47
      %p255 = scmp.lt.s32.totalorder %s22, 1
      %s256 = scalar_select %p255, %s22, 1
      %s257 = smul.addr %s256, 16
      %s258 = smul.addr %s257, 8
      %s259 = scalar_lea.vmem %s1, %s258
      %p260 = pneg %p76
      %p261 = pneg %p73
      %s262 = smul.u32 16, %s21
      %p263 = scmp.lt.s32.totalorder %s22, 1
      %s264 = scalar_select %p263, %s22, 1
      %p265 = scmp.lt.s32.totalorder %s262, 15
      %s266 = scalar_select %p265, %s262, 15
      %s267 = smul.addr %s264, 16
      %s268 = sadd.s32 %s266, %s267
      %s269 = smul.addr %s268, 8
      %s270 = scalar_lea.vmem %s2, %s269
      %p271 = pneg %p104
      %p272 = pneg %p101
      %p273 = scmp.lt.s32.totalorder %s22, 1
      %s274 = scalar_select %p273, %s22, 1
      %s275 = scalar_lea.vmem %s3, %s274
      %p276 = pneg %p130
      %p277 = pneg %p127
      %p278 = pneg %p158
      %p279 = pneg %p155
      %s280 = smul.u32 16, %s21
      %p281 = scmp.lt.s32.totalorder %s22, 1
      %s282 = scalar_select %p281, %s22, 1
      %p283 = scmp.lt.s32.totalorder %s280, 15
      %s284 = scalar_select %p283, %s280, 15
      %s285 = smul.addr %s282, 16
      %s286 = sadd.s32 %s284, %s285
      %s287 = smul.addr %s286, 8
      %s288 = scalar_lea.vmem %s4, %s287
      %p289 = pneg %p186
      %p290 = pneg %p183
      %s291 = smul.u32 16, %s21
      %p292 = scmp.lt.s32.totalorder %s22, 1
      %s293 = scalar_select %p292, %s22, 1
      %p294 = scmp.lt.s32.totalorder %s291, 15
      %s295 = scalar_select %p294, %s291, 15
      %s296 = smul.addr %s293, 16
      %s297 = sadd.s32 %s295, %s296
      %s298 = smul.addr %s297, 8
      %s299 = scalar_lea.vmem %s5, %s298
      %s300 = smul.u32 4, %s21
      %p301 = scmp.lt.s32.totalorder %s300, 3
      %s302 = scalar_select %p301, %s300, 3
      %s303 = smul.addr %s302, 8
      %s304 = scalar_lea.vmem %s0, %s303
      %s305 = smul.u32 4, %s21
      %p306 = scmp.lt.s32.totalorder %s22, 1
      %s307 = scalar_select %p306, %s22, 1
      %s308 = smul.addr %s307, 16
      %s309 = smul.addr %s308, 8
      %s310 = scalar_lea.vmem %s1, %s309
      %s311 = smul.u32 16, %s21
      %p312 = scmp.lt.s32.totalorder %s22, 1
      %s313 = scalar_select %p312, %s22, 1
      %p314 = scmp.lt.s32.totalorder %s311, 15
      %s315 = scalar_select %p314, %s311, 15
      %s316 = smul.addr %s313, 16
      %s317 = sadd.s32 %s315, %s316
      %s318 = smul.addr %s317, 8
      %s319 = scalar_lea.vmem %s2, %s318
      %s320 = smul.u32 16, %s21
      %p321 = scmp.lt.s32.totalorder %s22, 1
      %s322 = scalar_select %p321, %s22, 1
      %s323 = scalar_lea.vmem %s3, %s322
      %s324 = smul.u32 16, %s21
      %p325 = scmp.lt.s32.totalorder %s22, 1
      %s326 = scalar_select %p325, %s22, 1
      %p327 = scmp.lt.s32.totalorder %s324, 15
      %s328 = scalar_select %p327, %s324, 15
      %s329 = smul.addr %s326, 16
      %s330 = sadd.s32 %s328, %s329
      %s331 = smul.addr %s330, 8
      %s332 = scalar_lea.vmem %s4, %s331
      %s333 = smul.u32 16, %s21
      %s334 = smul.u32 16, %s21
      %p335 = scmp.lt.s32.totalorder %s22, 1
      %s336 = scalar_select %p335, %s22, 1
      %p337 = scmp.lt.s32.totalorder %s334, 15
      %s338 = scalar_select %p337, %s334, 15
      %s339 = smul.addr %s336, 16
      %s340 = sadd.s32 %s338, %s339
      %s341 = smul.addr %s340, 8
      %s342 = scalar_lea.vmem %s5, %s341
      %s343 = smul.u32 16, %s21
      %v344 = vld [vmem:[%s319] sm:$0xff]
      %v345 = vld [vmem:[%s319 + $0x8] sm:$0xff]
      %v346 = vld [vmem:[%s319 + $0x10] sm:$0xff]
      %v347 = vld [vmem:[%s319 + $0x18] sm:$0xff]
      %v348 = vld [vmem:[%s319 + $0x20] sm:$0xff]
      %v349 = vld [vmem:[%s319 + $0x28] sm:$0xff]
      %v350 = vld [vmem:[%s319 + $0x30] sm:$0xff]
      %v351 = vld [vmem:[%s319 + $0x38] sm:$0xff]
      %v352 = vld [vmem:[%s319 + $0x40] sm:$0xff]
      %v353 = vld [vmem:[%s319 + $0x48] sm:$0xff]
      %v354 = vld [vmem:[%s319 + $0x50] sm:$0xff]
      %v355 = vld [vmem:[%s319 + $0x58] sm:$0xff]
      %v356 = vld [vmem:[%s319 + $0x60] sm:$0xff]
      %v357 = vld [vmem:[%s319 + $0x68] sm:$0xff]
      %v358 = vld [vmem:[%s319 + $0x70] sm:$0xff]
      %v359 = vld [vmem:[%s319 + $0x78] sm:$0xff]
      %v360 = vld [vmem:[%s323] sm:$0x1]
      %362 = vset.pattern.permute.xlu0 0
      %363 = vperm.xlu0 %362, %v344
      %v364 = vpop.permute.xlu0 %363
      %367 = vset.pattern.permute.xlu0 0
      %368 = vperm.xlu0 %367, %v345
      %v369 = vpop.permute.xlu0 %368
      %372 = vset.pattern.permute.xlu0 0
      %373 = vperm.xlu0 %372, %v346
      %v374 = vpop.permute.xlu0 %373
      %377 = vset.pattern.permute.xlu0 0
      %378 = vperm.xlu0 %377, %v347
      %v379 = vpop.permute.xlu0 %378
      %382 = vset.pattern.permute.xlu0 0
      %383 = vperm.xlu0 %382, %v348
      %v384 = vpop.permute.xlu0 %383
      %387 = vset.pattern.permute.xlu0 0
      %388 = vperm.xlu0 %387, %v349
      %v389 = vpop.permute.xlu0 %388
      %392 = vset.pattern.permute.xlu0 0
      %393 = vperm.xlu0 %392, %v350
      %v394 = vpop.permute.xlu0 %393
      %397 = vset.pattern.permute.xlu0 0
      %398 = vperm.xlu0 %397, %v351
      %v399 = vpop.permute.xlu0 %398
      %402 = vset.pattern.permute.xlu0 0
      %403 = vperm.xlu0 %402, %v352
      %v404 = vpop.permute.xlu0 %403
      %407 = vset.pattern.permute.xlu0 0
      %408 = vperm.xlu0 %407, %v353
      %v409 = vpop.permute.xlu0 %408
      %412 = vset.pattern.permute.xlu0 0
      %413 = vperm.xlu0 %412, %v354
      %v414 = vpop.permute.xlu0 %413
      %417 = vset.pattern.permute.xlu0 0
      %418 = vperm.xlu0 %417, %v355
      %v419 = vpop.permute.xlu0 %418
      %422 = vset.pattern.permute.xlu0 0
      %423 = vperm.xlu0 %422, %v356
      %v424 = vpop.permute.xlu0 %423
      %427 = vset.pattern.permute.xlu0 0
      %428 = vperm.xlu0 %427, %v357
      %v429 = vpop.permute.xlu0 %428
      %432 = vset.pattern.permute.xlu0 0
      %433 = vperm.xlu0 %432, %v358
      %v434 = vpop.permute.xlu0 %433
      %437 = vset.pattern.permute.xlu0 0
      %438 = vperm.xlu0 %437, %v359
      %v439 = vpop.permute.xlu0 %438
      %v442 = vlaneseq
      %v443 = vshrl.u32 %v442, 7
      %v444 = vsub.s32 0, %v443
      %v445 = vrot.slane %v360, %v444
      %v447 = vadd.f32 %v364, %v445
      %v448 = vadd.f32 %v369, %v445
      %v449 = vadd.f32 %v374, %v445
      %v450 = vadd.f32 %v379, %v445
      %v451 = vadd.f32 %v384, %v445
      %v452 = vadd.f32 %v389, %v445
      %v453 = vadd.f32 %v394, %v445
      %v454 = vadd.f32 %v399, %v445
      %v455 = vadd.f32 %v404, %v445
      %v456 = vadd.f32 %v409, %v445
      %v457 = vadd.f32 %v414, %v445
      %v458 = vadd.f32 %v419, %v445
      %v459 = vadd.f32 %v424, %v445
      %v460 = vadd.f32 %v429, %v445
      %v461 = vadd.f32 %v434, %v445
      %v462 = vadd.f32 %v439, %v445
      %v463 = vmul.f32 %v447, 0.2
      %v464 = vmul.f32 %v448, 0.2
      %v465 = vmul.f32 %v449, 0.2
      %v466 = vmul.f32 %v450, 0.2
      %v467 = vmul.f32 %v451, 0.2
      %v468 = vmul.f32 %v452, 0.2
      %v469 = vmul.f32 %v453, 0.2
      %v470 = vmul.f32 %v454, 0.2
      %v471 = vmul.f32 %v455, 0.2
      %v472 = vmul.f32 %v456, 0.2
      %v473 = vmul.f32 %v457, 0.2
      %v474 = vmul.f32 %v458, 0.2
      %v475 = vmul.f32 %v459, 0.2
      %v476 = vmul.f32 %v460, 0.2
      %v477 = vmul.f32 %v461, 0.2
      %v478 = vmul.f32 %v462, 0.2
      %v479 = vmax.f32 %v447, %v463
      %v480 = vmax.f32 %v448, %v464
      %v481 = vmax.f32 %v449, %v465
      %v482 = vmax.f32 %v450, %v466
      %v483 = vmax.f32 %v451, %v467
      %v484 = vmax.f32 %v452, %v468
      %v485 = vmax.f32 %v453, %v469
      %v486 = vmax.f32 %v454, %v470
      %v487 = vmax.f32 %v455, %v471
      %v488 = vmax.f32 %v456, %v472
      %v489 = vmax.f32 %v457, %v473
      %v490 = vmax.f32 %v458, %v474
      %v491 = vmax.f32 %v459, %v475
      %v492 = vmax.f32 %v460, %v476
      %v493 = vmax.f32 %v461, %v477
      %v494 = vmax.f32 %v462, %v478
      %v495 = vld [vmem:[%s304] sm:$0xff]
      %v496 = vld [vmem:[%s304 + $0x8] sm:$0xff]
      %v497 = vld [vmem:[%s304 + $0x10] sm:$0xff]
      %v498 = vld [vmem:[%s304 + $0x18] sm:$0xff]
      %v499 = vunpack.c.0.s8 %v495
      %v500 = vunpack.c.1.s8 %v495
      %v501 = vunpack.c.2.s8 %v495
      %v502 = vunpack.c.3.s8 %v495
      %v503 = vunpack.c.0.s8 %v496
      %v504 = vunpack.c.1.s8 %v496
      %v505 = vunpack.c.2.s8 %v496
      %v506 = vunpack.c.3.s8 %v496
      %v507 = vunpack.c.0.s8 %v497
      %v508 = vunpack.c.1.s8 %v497
      %v509 = vunpack.c.2.s8 %v497
      %v510 = vunpack.c.3.s8 %v497
      %v511 = vunpack.c.0.s8 %v498
      %v512 = vunpack.c.1.s8 %v498
      %v513 = vunpack.c.2.s8 %v498
      %v514 = vunpack.c.3.s8 %v498
      %v515 = vcvt.s32.f32 %v499
      %v516 = vcvt.s32.f32 %v500
      %v517 = vcvt.s32.f32 %v501
      %v518 = vcvt.s32.f32 %v502
      %v519 = vcvt.s32.f32 %v503
      %v520 = vcvt.s32.f32 %v504
      %v521 = vcvt.s32.f32 %v505
      %v522 = vcvt.s32.f32 %v506
      %v523 = vcvt.s32.f32 %v507
      %v524 = vcvt.s32.f32 %v508
      %v525 = vcvt.s32.f32 %v509
      %v526 = vcvt.s32.f32 %v510
      %v527 = vcvt.s32.f32 %v511
      %v528 = vcvt.s32.f32 %v512
      %v529 = vcvt.s32.f32 %v513
      %v530 = vcvt.s32.f32 %v514
      %vm531 = vcmp.gt.f32.partialorder %v515, 0.0
      %vm532 = vcmp.gt.f32.partialorder %v516, 0.0
      %vm533 = vcmp.gt.f32.partialorder %v517, 0.0
      %vm534 = vcmp.gt.f32.partialorder %v518, 0.0
      %vm535 = vcmp.gt.f32.partialorder %v519, 0.0
      %vm536 = vcmp.gt.f32.partialorder %v520, 0.0
      %vm537 = vcmp.gt.f32.partialorder %v521, 0.0
      %vm538 = vcmp.gt.f32.partialorder %v522, 0.0
      %vm539 = vcmp.gt.f32.partialorder %v523, 0.0
      %vm540 = vcmp.gt.f32.partialorder %v524, 0.0
      %vm541 = vcmp.gt.f32.partialorder %v525, 0.0
      %vm542 = vcmp.gt.f32.partialorder %v526, 0.0
      %vm543 = vcmp.gt.f32.partialorder %v527, 0.0
      %vm544 = vcmp.gt.f32.partialorder %v528, 0.0
      %vm545 = vcmp.gt.f32.partialorder %v529, 0.0
      %vm546 = vcmp.gt.f32.partialorder %v530, 0.0
      %v547 = vsel %vm531, %v479, -9e+15
      %v548 = vsel %vm532, %v480, -9e+15
      %v549 = vsel %vm533, %v481, -9e+15
      %v550 = vsel %vm534, %v482, -9e+15
      %v551 = vsel %vm535, %v483, -9e+15
      %v552 = vsel %vm536, %v484, -9e+15
      %v553 = vsel %vm537, %v485, -9e+15
      %v554 = vsel %vm538, %v486, -9e+15
      %v555 = vsel %vm539, %v487, -9e+15
      %v556 = vsel %vm540, %v488, -9e+15
      %v557 = vsel %vm541, %v489, -9e+15
      %v558 = vsel %vm542, %v490, -9e+15
      %v559 = vsel %vm543, %v491, -9e+15
      %v560 = vsel %vm544, %v492, -9e+15
      %v561 = vsel %vm545, %v493, -9e+15
      %v562 = vsel %vm546, %v494, -9e+15
      %563 = vmax.xlane.f32.xlu0 %v547
      %v564 = vpop.xlane.xlu0 %563
      %565 = vmax.xlane.f32.xlu0 %v548
      %v566 = vpop.xlane.xlu0 %565
      %567 = vmax.xlane.f32.xlu0 %v549
      %v568 = vpop.xlane.xlu0 %567
      %569 = vmax.xlane.f32.xlu0 %v550
      %v570 = vpop.xlane.xlu0 %569
      %571 = vmax.xlane.f32.xlu0 %v551
      %v572 = vpop.xlane.xlu0 %571
      %573 = vmax.xlane.f32.xlu0 %v552
      %v574 = vpop.xlane.xlu0 %573
      %575 = vmax.xlane.f32.xlu0 %v553
      %v576 = vpop.xlane.xlu0 %575
      %577 = vmax.xlane.f32.xlu0 %v554
      %v578 = vpop.xlane.xlu0 %577
      %579 = vmax.xlane.f32.xlu0 %v555
      %v580 = vpop.xlane.xlu0 %579
      %581 = vmax.xlane.f32.xlu0 %v556
      %v582 = vpop.xlane.xlu0 %581
      %583 = vmax.xlane.f32.xlu0 %v557
      %v584 = vpop.xlane.xlu0 %583
      %585 = vmax.xlane.f32.xlu0 %v558
      %v586 = vpop.xlane.xlu0 %585
      %587 = vmax.xlane.f32.xlu0 %v559
      %v588 = vpop.xlane.xlu0 %587
      %589 = vmax.xlane.f32.xlu0 %v560
      %v590 = vpop.xlane.xlu0 %589
      %591 = vmax.xlane.f32.xlu0 %v561
      %v592 = vpop.xlane.xlu0 %591
      %593 = vmax.xlane.f32.xlu0 %v562
      %v594 = vpop.xlane.xlu0 %593
      %v595 = vsub.f32 %v547, %v564
      %v596 = vsub.f32 %v548, %v566
      %v597 = vsub.f32 %v549, %v568
      %v598 = vsub.f32 %v550, %v570
      %v599 = vsub.f32 %v551, %v572
      %v600 = vsub.f32 %v552, %v574
      %v601 = vsub.f32 %v553, %v576
      %v602 = vsub.f32 %v554, %v578
      %v603 = vsub.f32 %v555, %v580
      %v604 = vsub.f32 %v556, %v582
      %v605 = vsub.f32 %v557, %v584
      %v606 = vsub.f32 %v558, %v586
      %v607 = vsub.f32 %v559, %v588
      %v608 = vsub.f32 %v560, %v590
      %v609 = vsub.f32 %v561, %v592
      %v610 = vsub.f32 %v562, %v594
      %v611 = vmul.f32 %v595, 1.442695
      %v612 = vpow.pop %v611
      %v613 = vmul.f32 %v596, 1.442695
      %v614 = vpow.pop %v613
      %v615 = vmul.f32 %v597, 1.442695
      %v616 = vpow.pop %v615
      %v617 = vmul.f32 %v598, 1.442695
      %v618 = vpow.pop %v617
      %v619 = vmul.f32 %v599, 1.442695
      %v620 = vpow.pop %v619
      %v621 = vmul.f32 %v600, 1.442695
      %v622 = vpow.pop %v621
      %v623 = vmul.f32 %v601, 1.442695
      %v624 = vpow.pop %v623
      %v625 = vmul.f32 %v602, 1.442695
      %v626 = vpow.pop %v625
      %v627 = vmul.f32 %v603, 1.442695
      %v628 = vpow.pop %v627
      %v629 = vmul.f32 %v604, 1.442695
      %v630 = vpow.pop %v629
      %v631 = vmul.f32 %v605, 1.442695
      %v632 = vpow.pop %v631
      %v633 = vmul.f32 %v606, 1.442695
      %v634 = vpow.pop %v633
      %v635 = vmul.f32 %v607, 1.442695
      %v636 = vpow.pop %v635
      %v637 = vmul.f32 %v608, 1.442695
      %v638 = vpow.pop %v637
      %v639 = vmul.f32 %v609, 1.442695
      %v640 = vpow.pop %v639
      %v641 = vmul.f32 %v610, 1.442695
      %v642 = vpow.pop %v641
      %643 = vadd.xlane.f32.xlu0 %v612
      %v644 = vpop.xlane.xlu0 %643
      %645 = vadd.xlane.f32.xlu0 %v614
      %v646 = vpop.xlane.xlu0 %645
      %647 = vadd.xlane.f32.xlu0 %v616
      %v648 = vpop.xlane.xlu0 %647
      %649 = vadd.xlane.f32.xlu0 %v618
      %v650 = vpop.xlane.xlu0 %649
      %651 = vadd.xlane.f32.xlu0 %v620
      %v652 = vpop.xlane.xlu0 %651
      %653 = vadd.xlane.f32.xlu0 %v622
      %v654 = vpop.xlane.xlu0 %653
      %655 = vadd.xlane.f32.xlu0 %v624
      %v656 = vpop.xlane.xlu0 %655
      %657 = vadd.xlane.f32.xlu0 %v626
      %v658 = vpop.xlane.xlu0 %657
      %659 = vadd.xlane.f32.xlu0 %v628
      %v660 = vpop.xlane.xlu0 %659
      %661 = vadd.xlane.f32.xlu0 %v630
      %v662 = vpop.xlane.xlu0 %661
      %663 = vadd.xlane.f32.xlu0 %v632
      %v664 = vpop.xlane.xlu0 %663
      %665 = vadd.xlane.f32.xlu0 %v634
      %v666 = vpop.xlane.xlu0 %665
      %667 = vadd.xlane.f32.xlu0 %v636
      %v668 = vpop.xlane.xlu0 %667
      %669 = vadd.xlane.f32.xlu0 %v638
      %v670 = vpop.xlane.xlu0 %669
      %671 = vadd.xlane.f32.xlu0 %v640
      %v672 = vpop.xlane.xlu0 %671
      %673 = vadd.xlane.f32.xlu0 %v642
      %v674 = vpop.xlane.xlu0 %673
      %v675 = vrcp.pop %v644
      %v676 = vrcp.pop %v646
      %v677 = vrcp.pop %v648
      %v678 = vrcp.pop %v650
      %v679 = vrcp.pop %v652
      %v680 = vrcp.pop %v654
      %v681 = vrcp.pop %v656
      %v682 = vrcp.pop %v658
      %v683 = vrcp.pop %v660
      %v684 = vrcp.pop %v662
      %v685 = vrcp.pop %v664
      %v686 = vrcp.pop %v666
      %v687 = vrcp.pop %v668
      %v688 = vrcp.pop %v670
      %v689 = vrcp.pop %v672
      %v690 = vrcp.pop %v674
      %v691 = vmul.f32 %v612, %v675
      %v692 = vmul.f32 %v614, %v676
      %v693 = vmul.f32 %v616, %v677
      %v694 = vmul.f32 %v618, %v678
      %v695 = vmul.f32 %v620, %v679
      %v696 = vmul.f32 %v622, %v680
      %v697 = vmul.f32 %v624, %v681
      %v698 = vmul.f32 %v626, %v682
      %v699 = vmul.f32 %v628, %v683
      %v700 = vmul.f32 %v630, %v684
      %v701 = vmul.f32 %v632, %v685
      %v702 = vmul.f32 %v634, %v686
      %v703 = vmul.f32 %v636, %v687
      %v704 = vmul.f32 %v638, %v688
      %v705 = vmul.f32 %v640, %v689
      %v706 = vmul.f32 %v642, %v690
      %v707 = vld [vmem:[%s310] sm:$0xff]
      %v708 = vld [vmem:[%s310 + $0x8] sm:$0xff]
      %v709 = vld [vmem:[%s310 + $0x10] sm:$0xff]
      %v710 = vld [vmem:[%s310 + $0x18] sm:$0xff]
      %v711 = vld [vmem:[%s310 + $0x20] sm:$0xff]
      %v712 = vld [vmem:[%s310 + $0x28] sm:$0xff]
      %v713 = vld [vmem:[%s310 + $0x30] sm:$0xff]
      %v714 = vld [vmem:[%s310 + $0x38] sm:$0xff]
      %v715 = vld [vmem:[%s310 + $0x40] sm:$0xff]
      %v716 = vld [vmem:[%s310 + $0x48] sm:$0xff]
      %v717 = vld [vmem:[%s310 + $0x50] sm:$0xff]
      %v718 = vld [vmem:[%s310 + $0x58] sm:$0xff]
      %v719 = vld [vmem:[%s310 + $0x60] sm:$0xff]
      %v720 = vld [vmem:[%s310 + $0x68] sm:$0xff]
      %v721 = vld [vmem:[%s310 + $0x70] sm:$0xff]
      %v722 = vld [vmem:[%s310 + $0x78] sm:$0xff]
      %723 = vmatprep.subr.mxu0 0.0
      %724 = vmatpush1.msra.mxu0 %v722
      %725 = vmatprep.subr.mxu0 0.0
      %726 = vmatpush1.msra.mxu0 %v721
      %727 = vmatprep.subr.mxu0 0.0
      %728 = vmatpush1.msra.mxu0 %v720
      %729 = vmatprep.subr.mxu0 0.0
      %730 = vmatpush1.msra.mxu0 %v719
      %731 = vmatprep.subr.mxu0 0.0
      %732 = vmatpush1.msra.mxu0 %v718
      %733 = vmatprep.subr.mxu0 0.0
      %734 = vmatpush1.msra.mxu0 %v717
      %735 = vmatprep.subr.mxu0 0.0
      %736 = vmatpush1.msra.mxu0 %v716
      %737 = vmatprep.subr.mxu0 0.0
      %738 = vmatpush1.msra.mxu0 %v715
      %739 = vmatprep.subr.mxu0 0.0
      %740 = vmatpush1.msra.mxu0 %v714
      %741 = vmatprep.subr.mxu0 0.0
      %742 = vmatpush1.msra.mxu0 %v713
      %743 = vmatprep.subr.mxu0 0.0
      %744 = vmatpush1.msra.mxu0 %v712
      %745 = vmatprep.subr.mxu0 0.0
      %746 = vmatpush1.msra.mxu0 %v711
      %747 = vmatprep.subr.mxu0 0.0
      %748 = vmatpush1.msra.mxu0 %v710
      %749 = vmatprep.subr.mxu0 0.0
      %750 = vmatpush1.msra.mxu0 %v709
      %751 = vmatprep.subr.mxu0 0.0
      %752 = vmatpush1.msra.mxu0 %v708
      %753 = vmatprep.subr.mxu0 0.0
      %754 = vmatpush1.msra.mxu0 %v707
      %755 = vmatprep.subr.mxu0 0.0
      %756 = vmatpush2.msra.mxu0 0.0
      %757 = vmatprep.subr.mxu0 0.0
      %758 = vmatpush2.msra.mxu0 0.0
      %759 = vmatprep.subr.mxu0 0.0
      %760 = vmatpush2.msra.mxu0 0.0
      %761 = vmatprep.subr.mxu0 0.0
      %762 = vmatpush2.msra.mxu0 0.0
      %763 = vmatprep.subr.mxu0 0.0
      %764 = vmatpush2.msra.mxu0 0.0
      %765 = vmatprep.subr.mxu0 0.0
      %766 = vmatpush2.msra.mxu0 0.0
      %767 = vmatprep.subr.mxu0 0.0
      %768 = vmatpush2.msra.mxu0 0.0
      %769 = vmatprep.subr.mxu0 0.0
      %770 = vmatpush2.msra.mxu0 0.0
      %771 = vmatprep.subr.mxu0 0.0
      %772 = vmatpush2.msra.mxu0 0.0
      %773 = vmatprep.subr.mxu0 0.0
      %774 = vmatpush2.msra.mxu0 0.0
      %775 = vmatprep.subr.mxu0 0.0
      %776 = vmatpush2.msra.mxu0 0.0
      %777 = vmatprep.subr.mxu0 0.0
      %778 = vmatpush2.msra.mxu0 0.0
      %779 = vmatprep.subr.mxu0 0.0
      %780 = vmatpush2.msra.mxu0 0.0
      %781 = vmatprep.subr.mxu0 0.0
      %782 = vmatpush2.msra.mxu0 0.0
      %783 = vmatprep.subr.mxu0 0.0
      %784 = vmatpush2.msra.mxu0 0.0
      %785 = vmatprep.subr.mxu0 0.0
      %786 = vmatpush2.msra.mxu0 0.0
      %787 = vmatprep.mubr.f32.mxu0 0.0
      %788 = vmatmul.mubr.f32.gmra.mxu0 %v691
      %v789 = vpop.f32.mrf.mxu0
      %v790 = vadd.f32 0.0, %v789
      %v791 = vpop.f32.mrf.mxu0
      %792 = vmatprep.mubr.f32.mxu0 0.0
      %793 = vmatmul.mubr.f32.gmra.mxu0 %v692
      %v794 = vpop.f32.mrf.mxu0
      %v795 = vadd.f32 0.0, %v794
      %v796 = vpop.f32.mrf.mxu0
      %797 = vmatprep.mubr.f32.mxu0 0.0
      %798 = vmatmul.mubr.f32.gmra.mxu0 %v693
      %v799 = vpop.f32.mrf.mxu0
      %v800 = vadd.f32 0.0, %v799
      %v801 = vpop.f32.mrf.mxu0
      %802 = vmatprep.mubr.f32.mxu0 0.0
      %803 = vmatmul.mubr.f32.gmra.mxu0 %v694
      %v804 = vpop.f32.mrf.mxu0
      %v805 = vadd.f32 0.0, %v804
      %v806 = vpop.f32.mrf.mxu0
      %807 = vmatprep.mubr.f32.mxu0 0.0
      %808 = vmatmul.mubr.f32.gmra.mxu0 %v695
      %v809 = vpop.f32.mrf.mxu0
      %v810 = vadd.f32 0.0, %v809
      %v811 = vpop.f32.mrf.mxu0
      %812 = vmatprep.mubr.f32.mxu0 0.0
      %813 = vmatmul.mubr.f32.gmra.mxu0 %v696
      %v814 = vpop.f32.mrf.mxu0
      %v815 = vadd.f32 0.0, %v814
      %v816 = vpop.f32.mrf.mxu0
      %817 = vmatprep.mubr.f32.mxu0 0.0
      %818 = vmatmul.mubr.f32.gmra.mxu0 %v697
      %v819 = vpop.f32.mrf.mxu0
      %v820 = vadd.f32 0.0, %v819
      %v821 = vpop.f32.mrf.mxu0
      %822 = vmatprep.mubr.f32.mxu0 0.0
      %823 = vmatmul.mubr.f32.gmra.mxu0 %v698
      %v824 = vpop.f32.mrf.mxu0
      %v825 = vadd.f32 0.0, %v824
      %v826 = vpop.f32.mrf.mxu0
      %827 = vmatprep.mubr.f32.mxu0 0.0
      %828 = vmatmul.mubr.f32.gmra.mxu0 %v699
      %v829 = vpop.f32.mrf.mxu0
      %v830 = vadd.f32 0.0, %v829
      %v831 = vpop.f32.mrf.mxu0
      %832 = vmatprep.mubr.f32.mxu0 0.0
      %833 = vmatmul.mubr.f32.gmra.mxu0 %v700
      %v834 = vpop.f32.mrf.mxu0
      %v835 = vadd.f32 0.0, %v834
      %v836 = vpop.f32.mrf.mxu0
      %837 = vmatprep.mubr.f32.mxu0 0.0
      %838 = vmatmul.mubr.f32.gmra.mxu0 %v701
      %v839 = vpop.f32.mrf.mxu0
      %v840 = vadd.f32 0.0, %v839
      %v841 = vpop.f32.mrf.mxu0
      %842 = vmatprep.mubr.f32.mxu0 0.0
      %843 = vmatmul.mubr.f32.gmra.mxu0 %v702
      %v844 = vpop.f32.mrf.mxu0
      %v845 = vadd.f32 0.0, %v844
      %v846 = vpop.f32.mrf.mxu0
      %847 = vmatprep.mubr.f32.mxu0 0.0
      %848 = vmatmul.mubr.f32.gmra.mxu0 %v703
      %v849 = vpop.f32.mrf.mxu0
      %v850 = vadd.f32 0.0, %v849
      %v851 = vpop.f32.mrf.mxu0
      %852 = vmatprep.mubr.f32.mxu0 0.0
      %853 = vmatmul.mubr.f32.gmra.mxu0 %v704
      %v854 = vpop.f32.mrf.mxu0
      %v855 = vadd.f32 0.0, %v854
      %v856 = vpop.f32.mrf.mxu0
      %857 = vmatprep.mubr.f32.mxu0 0.0
      %858 = vmatmul.mubr.f32.gmra.mxu0 %v705
      %v859 = vpop.f32.mrf.mxu0
      %v860 = vadd.f32 0.0, %v859
      %v861 = vpop.f32.mrf.mxu0
      %862 = vmatprep.mubr.f32.mxu0 0.0
      %863 = vmatmul.mubr.f32.gmra.mxu0 %v706
      %v864 = vpop.f32.mrf.mxu0
      %v865 = vadd.f32 0.0, %v864
      %v866 = vpop.f32.mrf.mxu0
      %867 = vdwg.mxu0
      %v868 = vmax.f32 %v790, 0.0
      %v869 = vmax.f32 %v795, 0.0
      %v870 = vmax.f32 %v800, 0.0
      %v871 = vmax.f32 %v805, 0.0
      %v872 = vmax.f32 %v810, 0.0
      %v873 = vmax.f32 %v815, 0.0
      %v874 = vmax.f32 %v820, 0.0
      %v875 = vmax.f32 %v825, 0.0
      %v876 = vmax.f32 %v830, 0.0
      %v877 = vmax.f32 %v835, 0.0
      %v878 = vmax.f32 %v840, 0.0
      %v879 = vmax.f32 %v845, 0.0
      %v880 = vmax.f32 %v850, 0.0
      %v881 = vmax.f32 %v855, 0.0
      %v882 = vmax.f32 %v860, 0.0
      %v883 = vmax.f32 %v865, 0.0
      %884 = vst [vmem:[%s332] sm:$0xff] %v868
      %885 = vst [vmem:[%s332 + $0x8] sm:$0xff] %v869
      %886 = vst [vmem:[%s332 + $0x10] sm:$0xff] %v870
      %887 = vst [vmem:[%s332 + $0x18] sm:$0xff] %v871
      %888 = vst [vmem:[%s332 + $0x20] sm:$0xff] %v872
      %889 = vst [vmem:[%s332 + $0x28] sm:$0xff] %v873
      %890 = vst [vmem:[%s332 + $0x30] sm:$0xff] %v874
      %891 = vst [vmem:[%s332 + $0x38] sm:$0xff] %v875
      %892 = vst [vmem:[%s332 + $0x40] sm:$0xff] %v876
      %893 = vst [vmem:[%s332 + $0x48] sm:$0xff] %v877
      %894 = vst [vmem:[%s332 + $0x50] sm:$0xff] %v878
      %895 = vst [vmem:[%s332 + $0x58] sm:$0xff] %v879
      %896 = vst [vmem:[%s332 + $0x60] sm:$0xff] %v880
      %897 = vst [vmem:[%s332 + $0x68] sm:$0xff] %v881
      %898 = vst [vmem:[%s332 + $0x70] sm:$0xff] %v882
      %899 = vst [vmem:[%s332 + $0x78] sm:$0xff] %v883
      %900 = vst [vmem:[%s342] sm:$0xff] %v691
      %901 = vst [vmem:[%s342 + $0x8] sm:$0xff] %v692
      %902 = vst [vmem:[%s342 + $0x10] sm:$0xff] %v693
      %903 = vst [vmem:[%s342 + $0x18] sm:$0xff] %v694
      %904 = vst [vmem:[%s342 + $0x20] sm:$0xff] %v695
      %905 = vst [vmem:[%s342 + $0x28] sm:$0xff] %v696
      %906 = vst [vmem:[%s342 + $0x30] sm:$0xff] %v697
      %907 = vst [vmem:[%s342 + $0x38] sm:$0xff] %v698
      %908 = vst [vmem:[%s342 + $0x40] sm:$0xff] %v699
      %909 = vst [vmem:[%s342 + $0x48] sm:$0xff] %v700
      %910 = vst [vmem:[%s342 + $0x50] sm:$0xff] %v701
      %911 = vst [vmem:[%s342 + $0x58] sm:$0xff] %v702
      %912 = vst [vmem:[%s342 + $0x60] sm:$0xff] %v703
      %913 = vst [vmem:[%s342 + $0x68] sm:$0xff] %v704
      %914 = vst [vmem:[%s342 + $0x70] sm:$0xff] %v705
      %915 = vst [vmem:[%s342 + $0x78] sm:$0xff] %v706
      %s916 = smul.u32 16, %s21
      %p917 = scmp.lt.s32.totalorder %s22, 1
      %s918 = scalar_select %p917, %s22, 1
      %p919 = scmp.lt.s32.totalorder %s916, 15
      %s920 = scalar_select %p919, %s916, 15
      %s921 = smul.addr %s918, 16
      %s922 = sadd.s32 %s920, %s921
      %s923 = smul.addr %s922, 8
      %s924 = scalar_lea.vmem %s4, %s923
      %s925 = smul.u32 16, %s21
      %p926 = scmp.lt.s32.totalorder %s22, 1
      %s927 = scalar_select %p926, %s22, 1
      %p928 = scmp.lt.s32.totalorder %s925, 15
      %s929 = scalar_select %p928, %s925, 15
      %s930 = smul.addr %s927, 16
      %s931 = sadd.s32 %s929, %s930
      %s932 = smul.addr %s931, 8
      %s933 = scalar_lea.vmem %s5, %s932
      // Predicated region
      $region37: #{gat_forward.1} parent=35 // pred_check
        %p934 = pneg %p155
      $region38: #{gat_forward.1} parent=35 // pred_check_branch
        %936 = sbr.rel (%p934) target = $region40
      $region39: #{gat_forward.1} parent=35 // pred_region
        %s937 = smul.u32 16, %s21
      $region40: #{gat_forward.1} parent=35 // pred_fallthru
        _
      // Predicated region
      $region41: #{gat_forward.1} parent=35 // pred_check
        %p938 = pneg %p183
      $region42: #{gat_forward.1} parent=35 // pred_check_branch
        %940 = sbr.rel (%p938) target = $region44
      $region43: #{gat_forward.1} parent=35 // pred_region
        %s941 = smul.u32 16, %s21
      $region44: #{gat_forward.1} parent=35 // pred_fallthru
        _
    $region36: #{gat_forward.1} parent=5 // pred_fallthru
      _
    %p942 = scmp.le.s32.totalorder 2, %s12
    // Predicated region
    $region45: #{gat_forward.1} parent=5 // pred_check
      %p943 = pneg %p942
    $region46: #{gat_forward.1} parent=5 // pred_check_branch
      %945 = sbr.rel (%p943) target = $region48
    $region47: #{gat_forward.1} parent=5 // pred_region
      %s946 = ssub.s32 %s12, 2
      // Predicated region
      $region49: #{gat_forward.1} parent=47 // pred_check
        %p947 = pneg %p161
      $region50: #{gat_forward.1} parent=47 // pred_check_branch
        %949 = sbr.rel (%p947) target = $region52
      $region51: #{gat_forward.1} parent=47 // pred_region
        %s950 = smul.u32 16, %s23
        %p951 = scmp.lt.s32.totalorder %s24, 1
        %s952 = scalar_select %p951, %s24, 1
        %p953 = scmp.lt.s32.totalorder %s950, 15
        %s954 = scalar_select %p953, %s950, 15
        %s955 = smul.addr %s952, 16
        %s956 = sadd.s32 %s954, %s955
        %s957 = smul.addr %s956, 8
        %s958 = scalar_lea.vmem %s4, %s957
      $region52: #{gat_forward.1} parent=47 // pred_fallthru
        _
      // Predicated region
      $region53: #{gat_forward.1} parent=47 // pred_check
        %p959 = pneg %p189
      $region54: #{gat_forward.1} parent=47 // pred_check_branch
        %961 = sbr.rel (%p959) target = $region56
      $region55: #{gat_forward.1} parent=47 // pred_region
        %s962 = smul.u32 16, %s23
        %p963 = scmp.lt.s32.totalorder %s24, 1
        %s964 = scalar_select %p963, %s24, 1
        %p965 = scmp.lt.s32.totalorder %s962, 15
        %s966 = scalar_select %p965, %s962, 15
        %s967 = smul.addr %s964, 16
        %s968 = sadd.s32 %s966, %s967
        %s969 = smul.addr %s968, 8
        %s970 = scalar_lea.vmem %s5, %s969
      $region56: #{gat_forward.1} parent=47 // pred_fallthru
        _
    $region48: #{gat_forward.1} parent=5 // pred_fallthru
      _
  $region6: #{gat_forward.1} parent=0 // loop_footer
    %s16 = sadd.s32 1, %s12
  $region7: #{gat_forward.1} parent=0 // loop_footer_branch
    %11 = sbr.rel target = $region3
  $region8: #{gat_forward.1} parent=0 // loop_exit
    _

</llo_original>
